<compile_context>
chip_gen: v7x
topology: tpu7x:2x2x1
jax: 0.10.0
libtpu: 0.0.40
codegen_flags: <defaults>
</compile_context>

<pallas_src>
import functools

import jax
import jax.numpy as jnp
from jax.experimental import pallas as pl
from jax.experimental.pallas import tpu as pltpu


def _memory_encoder_kernel(x_ref, w_ref, b_ref, out_ref, acc_ref, *, keydim):
    c = pl.program_id(1)          # reduction-chunk index (axis marked "arbitrary")
    n_c = pl.num_programs(1)

    @pl.when(c == 0)
    def _():
        acc_ref[...] = jnp.zeros_like(acc_ref)

    x = x_ref[...]                                        # (C_in, n_tile), N on lanes
    # Fused key|value 1x1-conv heads: one MXU pass, lane-dense result.
    proj = jnp.dot(w_ref[...], x,
                   preferred_element_type=jnp.float32)    # (Ck+Cv, n_tile)
    proj = proj + b_ref[...]                              # bias broadcast over lanes
    key = proj[:keydim, :]                                # (Ck, n_tile)
    val = proj[keydim:, :]                                # (Cv, n_tile)

    # Partial context [Cv, Ck] = val @ key^T, contracting the lane (N) axis.
    # dot_general (trans_b form): no transpose materialized.
    acc_ref[...] += jax.lax.dot_general(
        val, key, (((1,), (1,)), ((), ())),
        preferred_element_type=jnp.float32)

    @pl.when(c == n_c - 1)
    def _():
        out_ref[...] = acc_ref[...].astype(out_ref.dtype)


def _pick_tile(n, max_tile):
    """Largest multiple of 128 that divides n and is <= max_tile (else full n)."""
    d = (max_tile // 128) * 128
    while d >= 128:
        if n % d == 0:
            return d
        d -= 128
    return n  # whole axis in a single block (always a legal block shape)


def memory_encoder_forward(spatiotemporal_noise, wk, bk, wv, bv,
                           *, max_tile_n=2048, num_parallel=2):
    """spatiotemporal_noise: [C_in, T, H, W] (PyTorch layout, no batch dim).

    Returns the global context_volume [valdim, keydim] (= GlobalContextVolume
    buffer after MemoryEncoder.forward()).
    """
    c_in, T, H, W = spatiotemporal_noise.shape
    keydim = wk.shape[1]
    valdim = wv.shape[1]
    n_total = T * H * W

    # Free, contiguous reshape: C_in on sublanes, flattened T*H*W on lanes.
    x = spatiotemporal_noise.reshape(c_in, n_total)
    # Fused key|value projection: (Ck+Cv, C_in) weight, (Ck+Cv, 1) bias.
    w = jnp.concatenate([wk.T, wv.T], axis=0)
    b = jnp.concatenate([bk, bv], axis=0).reshape(keydim + valdim, 1)

    n_tile = _pick_tile(n_total, max_tile_n)
    total_chunks = n_total // n_tile
    num_par = num_parallel if (num_parallel > 1
                               and total_chunks >= num_parallel
                               and total_chunks % num_parallel == 0) else 1
    n_chunks = total_chunks // num_par

    grid_spec = pltpu.PrefetchScalarGridSpec(
        num_scalar_prefetch=0,
        grid=(num_par, n_chunks),
        in_specs=[
            # Input chunk: (C_in, n_tile), lane-dense over the N = T*H*W axis.
            pl.BlockSpec((c_in, n_tile), lambda p, c: (0, p * n_chunks + c)),
            # Fused weight / bias: resident (same block every step).
            pl.BlockSpec((keydim + valdim, c_in), lambda p, c: (0, 0)),
            pl.BlockSpec((keydim + valdim, 1), lambda p, c: (0, 0)),
        ],
        out_specs=pl.BlockSpec((pl.Squeezed(), valdim, keydim),
                               lambda p, c: (p, 0, 0)),
        scratch_shapes=[pltpu.VMEM((valdim, keydim), jnp.float32)],
    )

    partials = pl.pallas_call(
        functools.partial(_memory_encoder_kernel, keydim=keydim),
        out_shape=jax.ShapeDtypeStruct((num_par, valdim, keydim), jnp.float32),
        grid_spec=grid_spec,
        compiler_params=pltpu.CompilerParams(
            dimension_semantics=("parallel", "arbitrary")),
    )(x, w, b)

    # GlobalContextVolume.update: mean over T frames == (sum over all N rows) / T.
    # (/T done once, after summing the per-core partials.)
    return jnp.sum(partials, axis=0) / T


def _reference(spatiotemporal_noise, wk, bk, wv, bv):
    """Pure-JAX reference of the same forward pass (per-frame formulation)."""
    c_in, T, H, W = spatiotemporal_noise.shape
    x = jnp.transpose(spatiotemporal_noise, (1, 2, 3, 0)).reshape(T, H * W, c_in)
    key = jnp.einsum('thc,ck->thk', x, wk) + bk[None, None, :]    # (T, HW, Ck)
    val = jnp.einsum('thc,cv->thv', x, wv) + bv[None, None, :]    # (T, HW, Cv)
    ctx = jnp.einsum('thv,thk->tvk', val, key)                    # (T, Cv, Ck)
    return jnp.mean(ctx, axis=0)                                  # (Cv, Ck)


if __name__ == "__main__":
    # Small, forward-consistent shapes.
    C_IN, T, H, W = 4, 8, 16, 16
    KEYDIM, VALDIM = 32, 32

    root = jax.random.PRNGKey(0)
    k_x, k_wk, k_bk, k_wv, k_bv = jax.random.split(root, 5)

    spatiotemporal_noise = jax.random.normal(k_x, (C_IN, T, H, W), jnp.float32)
    # Deterministic synthetic parameters for the key/value 1x1-conv heads.
    wk = jax.random.normal(k_wk, (C_IN, KEYDIM), jnp.float32) * 0.1
    bk = jax.random.normal(k_bk, (KEYDIM,), jnp.float32) * 0.1
    wv = jax.random.normal(k_wv, (C_IN, VALDIM), jnp.float32) * 0.1
    bv = jax.random.normal(k_bv, (VALDIM,), jnp.float32) * 0.1

    ref = _reference(spatiotemporal_noise, wk, bk, wv, bv)

    # Path 1: tiled reduction + 2-way parallel partials (exercises accumulator
    # init/finalize and the parallel grid axis).
    out_tiled = memory_encoder_forward(spatiotemporal_noise, wk, bk, wv, bv,
                                       max_tile_n=512, num_parallel=2)
    out_tiled = jax.block_until_ready(out_tiled)
    assert out_tiled.shape == (VALDIM, KEYDIM)
    assert jnp.allclose(out_tiled, ref, rtol=1e-3, atol=1e-3), "mismatch (tiled)"

    # Path 2: default tiling — at these sizes the whole problem is one grid step.
    out_single = memory_encoder_forward(spatiotemporal_noise, wk, bk, wv, bv)
    out_single = jax.block_until_ready(out_single)
    assert out_single.shape == (VALDIM, KEYDIM)
    assert jnp.allclose(out_single, ref, rtol=1e-3, atol=1e-3), "mismatch (single)"

    print("KERNEL_OK")
</pallas_src>

<mosaic_0001>
module attributes {stable_mosaic.version = 11 : i64} {
  func.func @_memory_encoder_kernel(%arg0: i32, %arg1: i32, %arg2: memref<4x512xf32, #tpu.memory_space<vmem>>, %arg3: memref<64x4xf32, #tpu.memory_space<vmem>>, %arg4: memref<64x1xf32, #tpu.memory_space<vmem>>, %arg5: memref<1x32x32xf32, #tpu.memory_space<vmem>>, %arg6: memref<32x32xf32, #tpu.memory_space<vmem>>) attributes {dimension_semantics = [#tpu.dimension_semantics<parallel>, #tpu.dimension_semantics<arbitrary>], iteration_bounds = array<i64: 2, 2>, scalar_prefetch = 0 : i64, scratch_operands = 1 : i64, tpu.core_type = #tpu.core_type<tc>, window_params = [{transform_indices = @transform_0, window_bounds = array<i64: 4, 512>}, {pipeline_mode = #tpu.pipeline_mode<synchronous>, transform_indices = @transform_1, window_bounds = array<i64: 64, 4>}, {pipeline_mode = #tpu.pipeline_mode<synchronous>, transform_indices = @transform_2, window_bounds = array<i64: 64, 1>}, {transform_indices = @transform_3, window_bounds = array<i64: 1, 32, 32>}]} {
    %c0_i32 = arith.constant 0 : i32
    %0 = arith.cmpi eq, %arg1, %c0_i32 : i32
    %1 = arith.extui %0 : i1 to i32
    %c0_i32_0 = arith.constant 0 : i32
    %2 = arith.cmpi ne, %1, %c0_i32_0 : i32
    scf.if %2 {
      %cst_12 = arith.constant 0.000000e+00 : f32
      %18 = vector.broadcast %cst_12 : f32 to vector<32x32xf32>
      %c0_13 = arith.constant 0 : index
      %c0_14 = arith.constant 0 : index
      %19 = vector.load %arg6[%c0_13, %c0_14] : memref<32x32xf32, #tpu.memory_space<vmem>>, vector<32x32xf32>
      tpu.vector_store %arg6[%c0_13, %c0_14], %18 {strides = array<i32>} : memref<32x32xf32, #tpu.memory_space<vmem>>, vector<32x32xf32>,
    } else {
    }
    %c0 = arith.constant 0 : index
    %c0_1 = arith.constant 0 : index
    %3 = vector.load %arg2[%c0, %c0_1] : memref<4x512xf32, #tpu.memory_space<vmem>>, vector<4x512xf32>
    %c0_2 = arith.constant 0 : index
    %c0_3 = arith.constant 0 : index
    %4 = vector.load %arg3[%c0_2, %c0_3] : memref<64x4xf32, #tpu.memory_space<vmem>>, vector<64x4xf32>
    %cst = arith.constant dense<0.000000e+00> : vector<64x512xf32>
    %5 = tpu.matmul %4, %3, %cst {dimension_numbers = #tpu.dot_dimension_numbers<[1], [0], [0], [1], [0, 0, 1, 1], [], []>} : vector<64x4xf32>, vector<4x512xf32>, vector<64x512xf32> -> vector<64x512xf32>
    %c0_4 = arith.constant 0 : index
    %c0_5 = arith.constant 0 : index
    %6 = vector.load %arg4[%c0_4, %c0_5] : memref<64x1xf32, #tpu.memory_space<vmem>>, vector<64x1xf32>
    %7 = vector.broadcast %6 : vector<64x1xf32> to vector<64x512xf32>
    %8 = arith.addf %5, %7 : vector<64x512xf32>
    %9 = vector.extract_strided_slice %8 {offsets = [0, 0], sizes = [32, 512], strides = [1, 1]} : vector<64x512xf32> to vector<32x512xf32>
    %10 = vector.extract_strided_slice %8 {offsets = [32, 0], sizes = [32, 512], strides = [1, 1]} : vector<64x512xf32> to vector<32x512xf32>
    %c0_6 = arith.constant 0 : index
    %c0_7 = arith.constant 0 : index
    %11 = vector.load %arg6[%c0_6, %c0_7] : memref<32x32xf32, #tpu.memory_space<vmem>>, vector<32x32xf32>
    %cst_8 = arith.constant dense<0.000000e+00> : vector<32x32xf32>
    %12 = tpu.matmul %10, %9, %cst_8 {dimension_numbers = #tpu.dot_dimension_numbers<[1], [1], [0], [0], [0, 0, 1, 0], [], []>} : vector<32x512xf32>, vector<32x512xf32>, vector<32x32xf32> -> vector<32x32xf32>
    %13 = arith.addf %11, %12 : vector<32x32xf32>
    %c0_9 = arith.constant 0 : index
    %c0_10 = arith.constant 0 : index
    %14 = vector.load %arg6[%c0_9, %c0_10] : memref<32x32xf32, #tpu.memory_space<vmem>>, vector<32x32xf32>
    tpu.vector_store %arg6[%c0_9, %c0_10], %13 {strides = array<i32>} : memref<32x32xf32, #tpu.memory_space<vmem>>, vector<32x32xf32>,
    %c1_i32 = arith.constant 1 : i32
    %15 = arith.cmpi eq, %arg1, %c1_i32 : i32
    %16 = arith.extui %15 : i1 to i32
    %c0_i32_11 = arith.constant 0 : i32
    %17 = arith.cmpi ne, %16, %c0_i32_11 : i32
    scf.if %17 {
      %c0_12 = arith.constant 0 : index
      %c0_13 = arith.constant 0 : index
      %18 = vector.load %arg6[%c0_12, %c0_13] : memref<32x32xf32, #tpu.memory_space<vmem>>, vector<32x32xf32>
      %c0_14 = arith.constant 0 : index
      %c0_15 = arith.constant 0 : index
      %c0_16 = arith.constant 0 : index
      %19 = vector.load %arg5[%c0_14, %c0_15, %c0_16] : memref<1x32x32xf32, #tpu.memory_space<vmem>>, vector<1x32x32xf32>
      %20 = vector.shape_cast %19 : vector<1x32x32xf32> to vector<32x32xf32>
      %21 = vector.shape_cast %18 : vector<32x32xf32> to vector<1x32x32xf32>
      tpu.vector_store %arg5[%c0_14, %c0_15, %c0_16], %21 {strides = array<i32>} : memref<1x32x32xf32, #tpu.memory_space<vmem>>, vector<1x32x32xf32>,
    } else {
    }
    return
  }
  func.func @transform_0(%arg0: i32, %arg1: i32) -> (i32, i32) {
    %c2_i32 = arith.constant 2 : i32
    %0 = arith.muli %arg0, %c2_i32 : i32
    %1 = arith.addi %0, %arg1 : i32
    %c0_i32 = arith.constant 0 : i32
    %c0_i32_0 = arith.constant 0 : i32
    return %c0_i32, %1 : i32, i32
  }
  func.func @transform_1(%arg0: i32, %arg1: i32) -> (i32, i32) {
    %c0_i32 = arith.constant 0 : i32
    %c0_i32_0 = arith.constant 0 : i32
    %c0_i32_1 = arith.constant 0 : i32
    return %c0_i32, %c0_i32_0 : i32, i32
  }
  func.func @transform_2(%arg0: i32, %arg1: i32) -> (i32, i32) {
    %c0_i32 = arith.constant 0 : i32
    %c0_i32_0 = arith.constant 0 : i32
    %c0_i32_1 = arith.constant 0 : i32
    return %c0_i32, %c0_i32_0 : i32, i32
  }
  func.func @transform_3(%arg0: i32, %arg1: i32) -> (i32, i32, i32) {
    %c0_i32 = arith.constant 0 : i32
    %c0_i32_0 = arith.constant 0 : i32
    %c0_i32_1 = arith.constant 0 : i32
    return %arg0, %c0_i32, %c0_i32_0 : i32, i32, i32
  }
}

</mosaic_0001>

<llo_original>
// kernel: tpu_custom_call.1
$region0: #{tpu_custom_call.1}
  #allocation0 [shape = 'u32[]', space=smem, size = 0x4, offset = 0x4, fixed_abs, tag = 'smem constant byte address 0x4 - core index']
  #allocation1 [shape = 'u32[144,128]{1,0:T(1,128)}', space=vmem, size = 0x12000, scoped, tag = 'internal scratch']
  #allocation2 [shape = 'f32[32,32]{1,0:T(8,128)}', space=vmem, size = 0x4000, scoped, tag = 'scratch operand']
  %s0 = inlined_call_operand.vmem [shape: f32[4,2048], index: 0, kind: input, shape index: {}]
  %s1 = inlined_call_operand.vmem [shape: f32[64,4], index: 1, kind: input, shape index: {}]
  %s2 = inlined_call_operand.vmem [shape: f32[64,1], index: 2, kind: input, shape index: {}]
  %s3 = inlined_call_operand.hbm [shape: f32[2,32,32], index: 3, kind: output, shape index: {}]
  %s4 = sld [smem:[#allocation0]]
  $region53: #{tpu_custom_call.1} parent=0
    _
  %s6 = ssub.s32 1, %s4
  %s7 = scalar_select 0, %s6, %s4
  $region1: #{tpu_custom_call.1} parent=0
    #allocation3 [shape = 'u8[32768]{0}', space=vmem, size = 0x8000, scoped, tag = 'output window, operand 0']
    #allocation4 [shape = 's32[2]{0}', space=sflag, size = 0x8, scoped, tag = 'scoped memory for tpu_custom_call.1']
    %8 = vsyncpa [#allocation4], 0
    %s9 = scalar_lea.sflag [#allocation4], 1
    %10 = vsyncpa %s9, 0
    loop: start=0, step=1, limit=6
    $region2: #{tpu_custom_call.1} parent=1 // loop_pre_header
      _
    $region3: #{tpu_custom_call.1} parent=1 // loop_header
      %s12 = sphi 0, %s16
      %p13 = scmp.ge.s32.totalorder %s12, 6
      %s19 = sphi 0, %s31
      %s20 = sphi 0, %s27
      %s21 = sphi 0, %s19
      %s22 = sphi 0, %s20
      %s23 = sphi 0, %s21
      %s24 = sphi 0, %s22
      %s38 = sphi 0, %s40
      %s41 = sphi 0, %s38
      %s42 = sphi 0, %s41
      %s58 = sphi 0, %s42
      %s62 = sphi 0, %s62
      %s64 = sphi 0, %s62
      %s65 = sphi 0, %s64
      %s79 = sphi 0, %s65
      %s83 = sphi 0, %s83
      %s85 = sphi 0, %s83
      %s86 = sphi 0, %s85
      %s100 = sphi 0, %s86
      %s106 = sphi 0, %s108
      %s109 = sphi 0, %s106
      %s110 = sphi 0, %s109
      %s126 = sphi 0, %s110
    $region4: #{tpu_custom_call.1} parent=1 // loop_header_branch
      %15 = sbr.rel (%p13) target = $region8
    $region5: #{tpu_custom_call.1} parent=1 // loop_body
      %s17 = ssub.s32 %s12, 1
      %s18 = ssub.s32 %s12, 2
      %s25 = sadd.s32 1, %s20
      %p26 = scmp.ge.s32.totalorder %s25, 2
      %s27 = scalar_select %p26, 0, %s25
      %s28 = sadd.s32 1, %s19
      %s29 = scalar_select %p26, %s28, %s19
      %p30 = scmp.ge.s32.totalorder %s29, 2
      %s31 = scalar_select %p30, 0, %s29
      %s32 = smul.u32 %s19, 2
      %s33 = sadd.s32 %s32, %s20
      %s34 = smul.u32 %s31, 2
      %s35 = sadd.s32 %s34, %s27
      %s36 = ssub.s32 %s33, %s35
      %p37 = scmp.eq.s32.totalorder %s36, 0
      %s39 = sadd.s32 %s38, 1
      %s40 = scalar_select %p37, %s38, %s39
      %p43 = pneg %p37
      %p44 = scmp.eq.s32.totalorder %s12, 3
      %p45 = por %p43, %p44
      %p46 = scmp.ne.s32.totalorder %s38, %s41
      %p47 = scmp.eq.s32.totalorder %s12, 0
      %p48 = por %p46, %p47
      %p49 = scmp.ne.s32.totalorder %s38, %s41
      %p50 = scmp.eq.s32.totalorder %s17, 3
      %p51 = por %p49, %p50
      %p52 = scmp.ne.s32.totalorder %s41, %s42
      %p53 = scmp.eq.s32.totalorder %s17, 0
      %p54 = por %p52, %p53
      %p55 = scmp.ne.s32.totalorder %s41, %s42
      %p56 = scmp.eq.s32.totalorder %s18, 3
      %p57 = por %p55, %p56
      %p59 = scmp.ne.s32.totalorder %s42, %s58
      %p60 = scmp.eq.s32.totalorder %s18, 0
      %p61 = por %p59, %p60
      %s63 = sadd.s32 %s62, 1
      %p66 = scmp.eq.s32.totalorder %s12, 3
      %p67 = scmp.ne.s32.totalorder %s62, %s64
      %p68 = scmp.eq.s32.totalorder %s12, 0
      %p69 = por %p67, %p68
      %p70 = scmp.ne.s32.totalorder %s62, %s64
      %p71 = scmp.eq.s32.totalorder %s17, 3
      %p72 = por %p70, %p71
      %p73 = scmp.ne.s32.totalorder %s64, %s65
      %p74 = scmp.eq.s32.totalorder %s17, 0
      %p75 = por %p73, %p74
      %p76 = scmp.ne.s32.totalorder %s64, %s65
      %p77 = scmp.eq.s32.totalorder %s18, 3
      %p78 = por %p76, %p77
      %p80 = scmp.ne.s32.totalorder %s65, %s79
      %p81 = scmp.eq.s32.totalorder %s18, 0
      %p82 = por %p80, %p81
      %s84 = sadd.s32 %s83, 1
      %p87 = scmp.eq.s32.totalorder %s12, 3
      %p88 = scmp.ne.s32.totalorder %s83, %s85
      %p89 = scmp.eq.s32.totalorder %s12, 0
      %p90 = por %p88, %p89
      %p91 = scmp.ne.s32.totalorder %s83, %s85
      %p92 = scmp.eq.s32.totalorder %s17, 3
      %p93 = por %p91, %p92
      %p94 = scmp.ne.s32.totalorder %s85, %s86
      %p95 = scmp.eq.s32.totalorder %s17, 0
      %p96 = por %p94, %p95
      %p97 = scmp.ne.s32.totalorder %s85, %s86
      %p98 = scmp.eq.s32.totalorder %s18, 3
      %p99 = por %p97, %p98
      %p101 = scmp.ne.s32.totalorder %s86, %s100
      %p102 = scmp.eq.s32.totalorder %s18, 0
      %p103 = por %p101, %p102
      %s104 = ssub.s32 %s19, %s31
      %p105 = scmp.eq.s32.totalorder %s104, 0
      %s107 = sadd.s32 %s106, 1
      %s108 = scalar_select %p105, %s106, %s107
      %p111 = pneg %p105
      %p112 = scmp.eq.s32.totalorder %s12, 3
      %p113 = por %p111, %p112
      %p114 = scmp.ne.s32.totalorder %s106, %s109
      %p115 = scmp.eq.s32.totalorder %s12, 0
      %p116 = por %p114, %p115
      %p117 = scmp.ne.s32.totalorder %s106, %s109
      %p118 = scmp.eq.s32.totalorder %s17, 3
      %p119 = por %p117, %p118
      %p120 = scmp.ne.s32.totalorder %s109, %s110
      %p121 = scmp.eq.s32.totalorder %s17, 0
      %p122 = por %p120, %p121
      %p123 = scmp.ne.s32.totalorder %s109, %s110
      %p124 = scmp.eq.s32.totalorder %s18, 3
      %p125 = por %p123, %p124
      %p127 = scmp.ne.s32.totalorder %s110, %s126
      %p128 = scmp.eq.s32.totalorder %s18, 0
      %p129 = por %p127, %p128
      %p130 = scmp.le.s32.totalorder 1, %s12
      %p131 = scmp.lt.s32.totalorder %s12, 5
      %p132 = pnand %p130, %p131
      %p133 = pneg %p132
      // Predicated region
      $region9: #{tpu_custom_call.1} parent=5 // pred_check
        _
      $region10: #{tpu_custom_call.1} parent=5 // pred_check_branch
        %135 = sbr.rel (%p132) target = $region12
      $region11: #{tpu_custom_call.1} parent=5 // pred_region
        %s136 = ssub.s32 %s12, 1
        // Predicated region
        $region13: #{tpu_custom_call.1} parent=11 // pred_check
          %p137 = pneg %p75
        $region14: #{tpu_custom_call.1} parent=11 // pred_check_branch
          %139 = sbr.rel (%p137) target = $region16
        $region15: #{tpu_custom_call.1} parent=11 // pred_region
          _
        $region16: #{tpu_custom_call.1} parent=11 // pred_fallthru
          _
        // Predicated region
        $region17: #{tpu_custom_call.1} parent=11 // pred_check
          %p140 = pneg %p96
        $region18: #{tpu_custom_call.1} parent=11 // pred_check_branch
          %142 = sbr.rel (%p140) target = $region20
        $region19: #{tpu_custom_call.1} parent=11 // pred_region
          _
        $region20: #{tpu_custom_call.1} parent=11 // pred_fallthru
          _
      $region12: #{tpu_custom_call.1} parent=5 // pred_fallthru
        _
      %p143 = scmp.lt.s32.totalorder %s12, 4
      // Predicated region
      $region21: #{tpu_custom_call.1} parent=5 // pred_check
        %p144 = pneg %p143
      $region22: #{tpu_custom_call.1} parent=5 // pred_check_branch
        %146 = sbr.rel (%p144) target = $region24
      $region23: #{tpu_custom_call.1} parent=5 // pred_region
        // Predicated region
        $region25: #{tpu_custom_call.1} parent=23 // pred_check
          %p147 = pneg %p48
        $region26: #{tpu_custom_call.1} parent=23 // pred_check_branch
          %149 = sbr.rel (%p147) target = $region28
        $region27: #{tpu_custom_call.1} parent=23 // pred_region
          %s150 = smul.u32 %s19, 2
          %s151 = sadd.s32 %s150, %s20
          %s152 = smul.u32 4, %s151
          %p153 = scmp.lt.s32.totalorder %s152, 15
          %s154 = scalar_select %p153, %s152, 15
          %s155 = smul.addr %s154, 4
          %s156 = scalar_lea.vmem %s0, %s155
          %s157 = smul.u32 %s19, 2
          %s158 = sadd.s32 %s157, %s20
          %s159 = smul.u32 4, %s158
        $region28: #{tpu_custom_call.1} parent=23 // pred_fallthru
          _
      $region24: #{tpu_custom_call.1} parent=5 // pred_fallthru
        _
      %p160 = scmp.le.s32.totalorder 1, %s12
      %p161 = scmp.lt.s32.totalorder %s12, 5
      %p162 = pnand %p160, %p161
      %p163 = pneg %p162
      // Predicated region
      $region29: #{tpu_custom_call.1} parent=5 // pred_check
        _
      $region30: #{tpu_custom_call.1} parent=5 // pred_check_branch
        %165 = sbr.rel (%p162) target = $region32
      $region31: #{tpu_custom_call.1} parent=5 // pred_region
        %s166 = ssub.s32 %s12, 1
        %s167 = smul.u32 %s21, 2
        %s168 = sadd.s32 %s167, %s22
        %s169 = smul.u32 4, %s168
        %p170 = scmp.lt.s32.totalorder %s169, 15
        %s171 = scalar_select %p170, %s169, 15
        %s172 = smul.addr %s171, 4
        %s173 = scalar_lea.vmem %s0, %s172
        %p174 = pneg %p54
        %p175 = pneg %p51
        %p176 = pneg %p75
        %p177 = pneg %p72
        %p178 = pneg %p96
        %p179 = pneg %p93
        %p180 = pneg %p122
        %p181 = pneg %p119
        %s182 = sand.u32 %s109, 1
        %s183 = scalar_lea.sflag [#allocation4], %s182
        %s184 = sand.u32 %s109, 1
        %s185 = smul.addr %s184, 32
        %s186 = scalar_lea.vmem [#allocation3], %s185
        %s187 = smul.u32 %s21, 2
        %s188 = sadd.s32 %s187, %s22
        %s189 = smul.u32 4, %s188
        %p190 = scmp.lt.s32.totalorder %s189, 15
        %s191 = scalar_select %p190, %s189, 15
        %s192 = smul.addr %s191, 4
        %s193 = scalar_lea.vmem %s0, %s192
        %s194 = smul.u32 %s21, 2
        %s195 = sadd.s32 %s194, %s22
        %s196 = smul.u32 4, %s195
        %p197 = scmp.eq.s32.totalorder %s22, 0
        // Predicated region
        $region33: #{tpu_custom_call.1} parent=31 // pred_check
          %p198 = pneg %p197
        $region34: #{tpu_custom_call.1} parent=31 // pred_check_branch
          %200 = sbr.rel (%p198) target = $region36
        $region35: #{tpu_custom_call.1} parent=31 // pred_region
          %vm201 = vcmask 261120
          %202 = vst.msk [vmem:[#allocation2] sm:$0xff] %vm201, 0.0
          %203 = vst.msk [vmem:[#allocation2 + $0x8] sm:$0xff] %vm201, 0.0
          %204 = vst.msk [vmem:[#allocation2 + $0x10] sm:$0xff] %vm201, 0.0
          %205 = vst.msk [vmem:[#allocation2 + $0x18] sm:$0xff] %vm201, 0.0
        $region36: #{tpu_custom_call.1} parent=31 // pred_fallthru
          _
        %v206 = vld [vmem:[%s193] sm:$0xff]
        %v207 = vld [vmem:[%s193 + $0x8] sm:$0xff]
        %v208 = vld [vmem:[%s1] sm:$0xff]
        %v209 = vld [vmem:[%s1 + $0x8] sm:$0xff]
        %v210 = vld [vmem:[%s1 + $0x10] sm:$0xff]
        %v211 = vld [vmem:[%s1 + $0x18] sm:$0xff]
        %v212 = vld [vmem:[%s1 + $0x20] sm:$0xff]
        %v213 = vld [vmem:[%s1 + $0x28] sm:$0xff]
        %v214 = vld [vmem:[%s1 + $0x30] sm:$0xff]
        %v215 = vld [vmem:[%s1 + $0x38] sm:$0xff]
        %v216 = vld [vmem:[%s2] sm:$0xff]
        %v217 = vld [vmem:[%s2 + $0x8] sm:$0xff]
        %v218 = vld [vmem:[%s2 + $0x10] sm:$0xff]
        %v219 = vld [vmem:[%s2 + $0x18] sm:$0xff]
        %v220 = vld [vmem:[%s2 + $0x20] sm:$0xff]
        %v221 = vld [vmem:[%s2 + $0x28] sm:$0xff]
        %v222 = vld [vmem:[%s2 + $0x30] sm:$0xff]
        %v223 = vld [vmem:[%s2 + $0x38] sm:$0xff]
        %225 = vset.pattern.permute.xlu0 0
        %226 = vperm.xlu0 %225, %v216
        %v227 = vpop.permute.xlu0 %226
        %230 = vset.pattern.permute.xlu0 0
        %231 = vperm.xlu0 %230, %v217
        %v232 = vpop.permute.xlu0 %231
        %235 = vset.pattern.permute.xlu0 0
        %236 = vperm.xlu0 %235, %v218
        %v237 = vpop.permute.xlu0 %236
        %240 = vset.pattern.permute.xlu0 0
        %241 = vperm.xlu0 %240, %v219
        %v242 = vpop.permute.xlu0 %241
        %245 = vset.pattern.permute.xlu0 0
        %246 = vperm.xlu0 %245, %v220
        %v247 = vpop.permute.xlu0 %246
        %250 = vset.pattern.permute.xlu0 0
        %251 = vperm.xlu0 %250, %v221
        %v252 = vpop.permute.xlu0 %251
        %255 = vset.pattern.permute.xlu0 0
        %256 = vperm.xlu0 %255, %v222
        %v257 = vpop.permute.xlu0 %256
        %260 = vset.pattern.permute.xlu0 0
        %261 = vperm.xlu0 %260, %v223
        %v262 = vpop.permute.xlu0 %261
        %v266 = vcombine.high %v206, %v206
        %v267 = vcombine.high %v207, %v207
        %vm268 = vcmask 31744
        %v270 = vsel %vm268, %v208, 0
        %v273 = vsel %vm268, %v209, 0
        %v276 = vsel %vm268, %v210, 0
        %v279 = vsel %vm268, %v211, 0
        %v282 = vsel %vm268, %v212, 0
        %v285 = vsel %vm268, %v213, 0
        %v288 = vsel %vm268, %v214, 0
        %v291 = vsel %vm268, %v215, 0
        %vm293 = vcmask 1043456
        %v294 = vsel %vm293, %v206, 0
        %v296 = vsel %vm293, %v266, 0
        %v298 = vsel %vm293, %v207, 0
        %v300 = vsel %vm293, %v267, 0
        %302 = vmatprep.subr.mxu0 %v296
        %303 = vmatpush1.msra.mxu0 %v294
        %304 = vmatprep.subr.mxu0 0.0
        %305 = vmatpush1.msra.mxu0 0.0
        %306 = vmatprep.subr.mxu0 0.0
        %307 = vmatpush1.msra.mxu0 0.0
        %308 = vmatprep.subr.mxu0 0.0
        %309 = vmatpush1.msra.mxu0 0.0
        %310 = vmatprep.subr.mxu0 0.0
        %311 = vmatpush1.msra.mxu0 0.0
        %312 = vmatprep.subr.mxu0 0.0
        %313 = vmatpush1.msra.mxu0 0.0
        %314 = vmatprep.subr.mxu0 0.0
        %315 = vmatpush1.msra.mxu0 0.0
        %316 = vmatprep.subr.mxu0 0.0
        %317 = vmatpush1.msra.mxu0 0.0
        %318 = vmatprep.subr.mxu0 0.0
        %319 = vmatpush1.msra.mxu0 0.0
        %320 = vmatprep.subr.mxu0 0.0
        %321 = vmatpush1.msra.mxu0 0.0
        %322 = vmatprep.subr.mxu0 0.0
        %323 = vmatpush1.msra.mxu0 0.0
        %324 = vmatprep.subr.mxu0 0.0
        %325 = vmatpush1.msra.mxu0 0.0
        %326 = vmatprep.subr.mxu0 0.0
        %327 = vmatpush1.msra.mxu0 0.0
        %328 = vmatprep.subr.mxu0 0.0
        %329 = vmatpush1.msra.mxu0 0.0
        %330 = vmatprep.subr.mxu0 0.0
        %331 = vmatpush1.msra.mxu0 0.0
        %332 = vmatprep.subr.mxu0 0.0
        %333 = vmatpush1.msra.mxu0 0.0
        %334 = vmatprep.subr.mxu0 0.0
        %335 = vmatpush1.msra.mxu0 0.0
        %336 = vmatprep.subr.mxu0 0.0
        %337 = vmatpush1.msra.mxu0 0.0
        %338 = vmatprep.subr.mxu0 0.0
        %339 = vmatpush1.msra.mxu0 0.0
        %340 = vmatprep.subr.mxu0 0.0
        %341 = vmatpush1.msra.mxu0 0.0
        %342 = vmatprep.subr.mxu0 0.0
        %343 = vmatpush1.msra.mxu0 0.0
        %344 = vmatprep.subr.mxu0 0.0
        %345 = vmatpush1.msra.mxu0 0.0
        %346 = vmatprep.subr.mxu0 0.0
        %347 = vmatpush1.msra.mxu0 0.0
        %348 = vmatprep.subr.mxu0 0.0
        %349 = vmatpush1.msra.mxu0 0.0
        %350 = vmatprep.subr.mxu0 0.0
        %351 = vmatpush1.msra.mxu0 0.0
        %352 = vmatprep.subr.mxu0 0.0
        %353 = vmatpush1.msra.mxu0 0.0
        %354 = vmatprep.subr.mxu0 0.0
        %355 = vmatpush1.msra.mxu0 0.0
        %356 = vmatprep.subr.mxu0 0.0
        %357 = vmatpush1.msra.mxu0 0.0
        %358 = vmatprep.subr.mxu0 0.0
        %359 = vmatpush1.msra.mxu0 0.0
        %360 = vmatprep.subr.mxu0 0.0
        %361 = vmatpush1.msra.mxu0 0.0
        %362 = vmatprep.subr.mxu0 0.0
        %363 = vmatpush1.msra.mxu0 0.0
        %364 = vmatprep.subr.mxu0 0.0
        %365 = vmatpush1.msra.mxu0 0.0
        %366 = vmatprep.mubr.f32.mxu0 0.0
        %367 = vmatmul.mubr.f32.gmra.mrb[0].mxu0 %v270
        %v368 = vpop.f32.mrb[0].mxu0
        %v369 = vadd.f32 %v227, %v368
        %v370 = vpop.f32.mrb[0].mxu0
        %v371 = vadd.f32 %v227, %v370
        %372 = vmatprep.mubr.f32.mxu0 0.0
        %373 = vmatmul.mubr.f32.gmra.mrb[0].mxu0 %v273
        %v374 = vpop.f32.mrb[0].mxu0
        %v375 = vadd.f32 %v232, %v374
        %v376 = vpop.f32.mrb[0].mxu0
        %v377 = vadd.f32 %v232, %v376
        %378 = vmatprep.mubr.f32.mxu0 0.0
        %379 = vmatmul.mubr.f32.gmra.mrb[0].mxu0 %v276
        %v380 = vpop.f32.mrb[0].mxu0
        %v381 = vadd.f32 %v237, %v380
        %v382 = vpop.f32.mrb[0].mxu0
        %v383 = vadd.f32 %v237, %v382
        %384 = vmatprep.mubr.f32.mxu0 0.0
        %385 = vmatmul.mubr.f32.gmra.mrb[0].mxu0 %v279
        %v386 = vpop.f32.mrb[0].mxu0
        %v387 = vadd.f32 %v242, %v386
        %v388 = vpop.f32.mrb[0].mxu0
        %v389 = vadd.f32 %v242, %v388
        %390 = vmatprep.mubr.f32.mxu0 0.0
        %391 = vmatmul.mubr.f32.gmra.mrb[0].mxu0 %v282
        %v392 = vpop.f32.mrb[0].mxu0
        %v393 = vadd.f32 %v247, %v392
        %v394 = vpop.f32.mrb[0].mxu0
        %v395 = vadd.f32 %v247, %v394
        %396 = vmatprep.mubr.f32.mxu0 0.0
        %397 = vmatmul.mubr.f32.gmra.mrb[0].mxu0 %v285
        %v398 = vpop.f32.mrb[0].mxu0
        %v399 = vadd.f32 %v252, %v398
        %v400 = vpop.f32.mrb[0].mxu0
        %v401 = vadd.f32 %v252, %v400
        %402 = vmatprep.mubr.f32.mxu0 0.0
        %403 = vmatmul.mubr.f32.gmra.mrb[0].mxu0 %v288
        %v404 = vpop.f32.mrb[0].mxu0
        %v405 = vadd.f32 %v257, %v404
        %v406 = vpop.f32.mrb[0].mxu0
        %v407 = vadd.f32 %v257, %v406
        %408 = vmatprep.mubr.f32.mxu0 0.0
        %409 = vmatmul.mubr.f32.gmra.mrb[0].mxu0 %v291
        %v410 = vpop.f32.mrb[0].mxu0
        %v411 = vadd.f32 %v262, %v410
        %v412 = vpop.f32.mrb[0].mxu0
        %v413 = vadd.f32 %v262, %v412
        %414 = vdwg.mxu0
        %415 = vmatprep.subr.mxu0 %v300
        %416 = vmatpush1.msra.mxu0 %v298
        %417 = vmatprep.subr.mxu0 0.0
        %418 = vmatpush1.msra.mxu0 0.0
        %419 = vmatprep.subr.mxu0 0.0
        %420 = vmatpush1.msra.mxu0 0.0
        %421 = vmatprep.subr.mxu0 0.0
        %422 = vmatpush1.msra.mxu0 0.0
        %423 = vmatprep.subr.mxu0 0.0
        %424 = vmatpush1.msra.mxu0 0.0
        %425 = vmatprep.subr.mxu0 0.0
        %426 = vmatpush1.msra.mxu0 0.0
        %427 = vmatprep.subr.mxu0 0.0
        %428 = vmatpush1.msra.mxu0 0.0
        %429 = vmatprep.subr.mxu0 0.0
        %430 = vmatpush1.msra.mxu0 0.0
        %431 = vmatprep.subr.mxu0 0.0
        %432 = vmatpush1.msra.mxu0 0.0
        %433 = vmatprep.subr.mxu0 0.0
        %434 = vmatpush1.msra.mxu0 0.0
        %435 = vmatprep.subr.mxu0 0.0
        %436 = vmatpush1.msra.mxu0 0.0
        %437 = vmatprep.subr.mxu0 0.0
        %438 = vmatpush1.msra.mxu0 0.0
        %439 = vmatprep.subr.mxu0 0.0
        %440 = vmatpush1.msra.mxu0 0.0
        %441 = vmatprep.subr.mxu0 0.0
        %442 = vmatpush1.msra.mxu0 0.0
        %443 = vmatprep.subr.mxu0 0.0
        %444 = vmatpush1.msra.mxu0 0.0
        %445 = vmatprep.subr.mxu0 0.0
        %446 = vmatpush1.msra.mxu0 0.0
        %447 = vmatprep.subr.mxu0 0.0
        %448 = vmatpush1.msra.mxu0 0.0
        %449 = vmatprep.subr.mxu0 0.0
        %450 = vmatpush1.msra.mxu0 0.0
        %451 = vmatprep.subr.mxu0 0.0
        %452 = vmatpush1.msra.mxu0 0.0
        %453 = vmatprep.subr.mxu0 0.0
        %454 = vmatpush1.msra.mxu0 0.0
        %455 = vmatprep.subr.mxu0 0.0
        %456 = vmatpush1.msra.mxu0 0.0
        %457 = vmatprep.subr.mxu0 0.0
        %458 = vmatpush1.msra.mxu0 0.0
        %459 = vmatprep.subr.mxu0 0.0
        %460 = vmatpush1.msra.mxu0 0.0
        %461 = vmatprep.subr.mxu0 0.0
        %462 = vmatpush1.msra.mxu0 0.0
        %463 = vmatprep.subr.mxu0 0.0
        %464 = vmatpush1.msra.mxu0 0.0
        %465 = vmatprep.subr.mxu0 0.0
        %466 = vmatpush1.msra.mxu0 0.0
        %467 = vmatprep.subr.mxu0 0.0
        %468 = vmatpush1.msra.mxu0 0.0
        %469 = vmatprep.subr.mxu0 0.0
        %470 = vmatpush1.msra.mxu0 0.0
        %471 = vmatprep.subr.mxu0 0.0
        %472 = vmatpush1.msra.mxu0 0.0
        %473 = vmatprep.subr.mxu0 0.0
        %474 = vmatpush1.msra.mxu0 0.0
        %475 = vmatprep.subr.mxu0 0.0
        %476 = vmatpush1.msra.mxu0 0.0
        %477 = vmatprep.subr.mxu0 0.0
        %478 = vmatpush1.msra.mxu0 0.0
        %479 = vmatprep.mubr.f32.mxu0 0.0
        %480 = vmatmul.mubr.f32.gmra.mrb[0].mxu0 %v270
        %v481 = vpop.f32.mrb[0].mxu0
        %v482 = vadd.f32 %v227, %v481
        %v483 = vpop.f32.mrb[0].mxu0
        %v484 = vadd.f32 %v227, %v483
        %485 = vmatprep.mubr.f32.mxu0 0.0
        %486 = vmatmul.mubr.f32.gmra.mrb[0].mxu0 %v273
        %v487 = vpop.f32.mrb[0].mxu0
        %v488 = vadd.f32 %v232, %v487
        %v489 = vpop.f32.mrb[0].mxu0
        %v490 = vadd.f32 %v232, %v489
        %491 = vmatprep.mubr.f32.mxu0 0.0
        %492 = vmatmul.mubr.f32.gmra.mrb[0].mxu0 %v276
        %v493 = vpop.f32.mrb[0].mxu0
        %v494 = vadd.f32 %v237, %v493
        %v495 = vpop.f32.mrb[0].mxu0
        %v496 = vadd.f32 %v237, %v495
        %497 = vmatprep.mubr.f32.mxu0 0.0
        %498 = vmatmul.mubr.f32.gmra.mrb[0].mxu0 %v279
        %v499 = vpop.f32.mrb[0].mxu0
        %v500 = vadd.f32 %v242, %v499
        %v501 = vpop.f32.mrb[0].mxu0
        %v502 = vadd.f32 %v242, %v501
        %503 = vmatprep.mubr.f32.mxu0 0.0
        %504 = vmatmul.mubr.f32.gmra.mrb[0].mxu0 %v282
        %v505 = vpop.f32.mrb[0].mxu0
        %v506 = vadd.f32 %v247, %v505
        %v507 = vpop.f32.mrb[0].mxu0
        %v508 = vadd.f32 %v247, %v507
        %509 = vmatprep.mubr.f32.mxu0 0.0
        %510 = vmatmul.mubr.f32.gmra.mrb[0].mxu0 %v285
        %v511 = vpop.f32.mrb[0].mxu0
        %v512 = vadd.f32 %v252, %v511
        %v513 = vpop.f32.mrb[0].mxu0
        %v514 = vadd.f32 %v252, %v513
        %515 = vmatprep.mubr.f32.mxu0 0.0
        %516 = vmatmul.mubr.f32.gmra.mrb[0].mxu0 %v288
        %v517 = vpop.f32.mrb[0].mxu0
        %v518 = vadd.f32 %v257, %v517
        %v519 = vpop.f32.mrb[0].mxu0
        %v520 = vadd.f32 %v257, %v519
        %521 = vmatprep.mubr.f32.mxu0 0.0
        %522 = vmatmul.mubr.f32.gmra.mrb[0].mxu0 %v291
        %v523 = vpop.f32.mrb[0].mxu0
        %v524 = vadd.f32 %v262, %v523
        %v525 = vpop.f32.mrb[0].mxu0
        %v526 = vadd.f32 %v262, %v525
        %527 = vdwg.mxu0
        %v528 = vld [vmem:[#allocation2] sm:$0xff]
        %v529 = vld [vmem:[#allocation2 + $0x8] sm:$0xff]
        %v530 = vld [vmem:[#allocation2 + $0x10] sm:$0xff]
        %v531 = vld [vmem:[#allocation2 + $0x18] sm:$0xff]
        %532 = vmatprep.subr.mxu0 %v371
        %533 = vmatpush1.xpose.msra.mxu0 %v369
        %534 = vmatprep.subr.mxu0 %v377
        %535 = vmatpush1.xpose.msra.mxu0 %v375
        %536 = vmatprep.subr.mxu0 %v383
        %537 = vmatpush1.xpose.msra.mxu0 %v381
        %538 = vmatprep.subr.mxu0 %v389
        %539 = vmatpush1.xpose.msra.mxu0 %v387
        %540 = vmatprep.subr.mxu0 0.0
        %541 = vmatpush1.xpose.msra.mxu0 0.0
        %542 = vmatprep.subr.mxu0 0.0
        %543 = vmatpush1.xpose.msra.mxu0 0.0
        %544 = vmatprep.subr.mxu0 0.0
        %545 = vmatpush1.xpose.msra.mxu0 0.0
        %546 = vmatprep.subr.mxu0 0.0
        %547 = vmatpush1.xpose.msra.mxu0 0.0
        %548 = vmatprep.subr.mxu0 0.0
        %549 = vmatpush1.xpose.msra.mxu0 0.0
        %550 = vmatprep.subr.mxu0 0.0
        %551 = vmatpush1.xpose.msra.mxu0 0.0
        %552 = vmatprep.subr.mxu0 0.0
        %553 = vmatpush1.xpose.msra.mxu0 0.0
        %554 = vmatprep.subr.mxu0 0.0
        %555 = vmatpush1.xpose.msra.mxu0 0.0
        %556 = vmatprep.subr.mxu0 0.0
        %557 = vmatpush1.xpose.msra.mxu0 0.0
        %558 = vmatprep.subr.mxu0 0.0
        %559 = vmatpush1.xpose.msra.mxu0 0.0
        %560 = vmatprep.subr.mxu0 0.0
        %561 = vmatpush1.xpose.msra.mxu0 0.0
        %562 = vmatprep.subr.mxu0 0.0
        %563 = vmatpush1.xpose.msra.mxu0 0.0
        %564 = vmatprep.subr.mxu0 0.0
        %565 = vmatpush1.xpose.msra.mxu0 0.0
        %566 = vmatprep.subr.mxu0 0.0
        %567 = vmatpush1.xpose.msra.mxu0 0.0
        %568 = vmatprep.subr.mxu0 0.0
        %569 = vmatpush1.xpose.msra.mxu0 0.0
        %570 = vmatprep.subr.mxu0 0.0
        %571 = vmatpush1.xpose.msra.mxu0 0.0
        %572 = vmatprep.subr.mxu0 0.0
        %573 = vmatpush1.xpose.msra.mxu0 0.0
        %574 = vmatprep.subr.mxu0 0.0
        %575 = vmatpush1.xpose.msra.mxu0 0.0
        %576 = vmatprep.subr.mxu0 0.0
        %577 = vmatpush1.xpose.msra.mxu0 0.0
        %578 = vmatprep.subr.mxu0 0.0
        %579 = vmatpush1.xpose.msra.mxu0 0.0
        %580 = vmatprep.subr.mxu0 0.0
        %581 = vmatpush1.xpose.msra.mxu0 0.0
        %582 = vmatprep.subr.mxu0 0.0
        %583 = vmatpush1.xpose.msra.mxu0 0.0
        %584 = vmatprep.subr.mxu0 0.0
        %585 = vmatpush1.xpose.msra.mxu0 0.0
        %586 = vmatprep.subr.mxu0 0.0
        %587 = vmatpush1.xpose.msra.mxu0 0.0
        %588 = vmatprep.subr.mxu0 0.0
        %589 = vmatpush1.xpose.msra.mxu0 0.0
        %590 = vmatprep.subr.mxu0 0.0
        %591 = vmatpush1.xpose.msra.mxu0 0.0
        %592 = vmatprep.subr.mxu0 0.0
        %593 = vmatpush1.xpose.msra.mxu0 0.0
        %594 = vmatprep.subr.mxu0 0.0
        %595 = vmatpush1.xpose.msra.mxu0 0.0
        %596 = vmatprep.mubr.f32.mxu0 %v395
        %597 = vmatmul.mubr.f32.gmra.mrb[0].mxu0 %v393
        %v598 = vpop.f32.mrb[0].mxu0
        %v599 = vadd.f32 0.0, %v598
        %v600 = vpop.f32.mrb[0].mxu0
        %601 = vmatprep.mubr.f32.mxu0 %v401
        %602 = vmatmul.mubr.f32.gmra.mrb[0].mxu0 %v399
        %v603 = vpop.f32.mrb[0].mxu0
        %v604 = vadd.f32 0.0, %v603
        %v605 = vpop.f32.mrb[0].mxu0
        %606 = vmatprep.mubr.f32.mxu0 %v407
        %607 = vmatmul.mubr.f32.gmra.mrb[0].mxu0 %v405
        %v608 = vpop.f32.mrb[0].mxu0
        %v609 = vadd.f32 0.0, %v608
        %v610 = vpop.f32.mrb[0].mxu0
        %611 = vmatprep.mubr.f32.mxu0 %v413
        %612 = vmatmul.mubr.f32.gmra.mrb[0].mxu0 %v411
        %v613 = vpop.f32.mrb[0].mxu0
        %v614 = vadd.f32 0.0, %v613
        %v615 = vpop.f32.mrb[0].mxu0
        %616 = vdwg.mxu0
        %617 = vmatprep.subr.mxu0 %v484
        %618 = vmatpush1.xpose.msra.mxu0 %v482
        %619 = vmatprep.subr.mxu0 %v490
        %620 = vmatpush1.xpose.msra.mxu0 %v488
        %621 = vmatprep.subr.mxu0 %v496
        %622 = vmatpush1.xpose.msra.mxu0 %v494
        %623 = vmatprep.subr.mxu0 %v502
        %624 = vmatpush1.xpose.msra.mxu0 %v500
        %625 = vmatprep.subr.mxu0 0.0
        %626 = vmatpush1.xpose.msra.mxu0 0.0
        %627 = vmatprep.subr.mxu0 0.0
        %628 = vmatpush1.xpose.msra.mxu0 0.0
        %629 = vmatprep.subr.mxu0 0.0
        %630 = vmatpush1.xpose.msra.mxu0 0.0
        %631 = vmatprep.subr.mxu0 0.0
        %632 = vmatpush1.xpose.msra.mxu0 0.0
        %633 = vmatprep.subr.mxu0 0.0
        %634 = vmatpush1.xpose.msra.mxu0 0.0
        %635 = vmatprep.subr.mxu0 0.0
        %636 = vmatpush1.xpose.msra.mxu0 0.0
        %637 = vmatprep.subr.mxu0 0.0
        %638 = vmatpush1.xpose.msra.mxu0 0.0
        %639 = vmatprep.subr.mxu0 0.0
        %640 = vmatpush1.xpose.msra.mxu0 0.0
        %641 = vmatprep.subr.mxu0 0.0
        %642 = vmatpush1.xpose.msra.mxu0 0.0
        %643 = vmatprep.subr.mxu0 0.0
        %644 = vmatpush1.xpose.msra.mxu0 0.0
        %645 = vmatprep.subr.mxu0 0.0
        %646 = vmatpush1.xpose.msra.mxu0 0.0
        %647 = vmatprep.subr.mxu0 0.0
        %648 = vmatpush1.xpose.msra.mxu0 0.0
        %649 = vmatprep.subr.mxu0 0.0
        %650 = vmatpush1.xpose.msra.mxu0 0.0
        %651 = vmatprep.subr.mxu0 0.0
        %652 = vmatpush1.xpose.msra.mxu0 0.0
        %653 = vmatprep.subr.mxu0 0.0
        %654 = vmatpush1.xpose.msra.mxu0 0.0
        %655 = vmatprep.subr.mxu0 0.0
        %656 = vmatpush1.xpose.msra.mxu0 0.0
        %657 = vmatprep.subr.mxu0 0.0
        %658 = vmatpush1.xpose.msra.mxu0 0.0
        %659 = vmatprep.subr.mxu0 0.0
        %660 = vmatpush1.xpose.msra.mxu0 0.0
        %661 = vmatprep.subr.mxu0 0.0
        %662 = vmatpush1.xpose.msra.mxu0 0.0
        %663 = vmatprep.subr.mxu0 0.0
        %664 = vmatpush1.xpose.msra.mxu0 0.0
        %665 = vmatprep.subr.mxu0 0.0
        %666 = vmatpush1.xpose.msra.mxu0 0.0
        %667 = vmatprep.subr.mxu0 0.0
        %668 = vmatpush1.xpose.msra.mxu0 0.0
        %669 = vmatprep.subr.mxu0 0.0
        %670 = vmatpush1.xpose.msra.mxu0 0.0
        %671 = vmatprep.subr.mxu0 0.0
        %672 = vmatpush1.xpose.msra.mxu0 0.0
        %673 = vmatprep.subr.mxu0 0.0
        %674 = vmatpush1.xpose.msra.mxu0 0.0
        %675 = vmatprep.subr.mxu0 0.0
        %676 = vmatpush1.xpose.msra.mxu0 0.0
        %677 = vmatprep.subr.mxu0 0.0
        %678 = vmatpush1.xpose.msra.mxu0 0.0
        %679 = vmatprep.subr.mxu0 0.0
        %680 = vmatpush1.xpose.msra.mxu0 0.0
        %681 = vmatprep.mubr.f32.mxu0 %v508
        %682 = vmatmul.mubr.f32.gmra.mrb[0].mxu0 %v506
        %v683 = vpop.f32.mrb[0].mxu0
        %v684 = vadd.f32 %v599, %v683
        %v685 = vpop.f32.mrb[0].mxu0
        %686 = vmatprep.mubr.f32.mxu0 %v514
        %687 = vmatmul.mubr.f32.gmra.mrb[0].mxu0 %v512
        %v688 = vpop.f32.mrb[0].mxu0
        %v689 = vadd.f32 %v604, %v688
        %v690 = vpop.f32.mrb[0].mxu0
        %691 = vmatprep.mubr.f32.mxu0 %v520
        %692 = vmatmul.mubr.f32.gmra.mrb[0].mxu0 %v518
        %v693 = vpop.f32.mrb[0].mxu0
        %v694 = vadd.f32 %v609, %v693
        %v695 = vpop.f32.mrb[0].mxu0
        %696 = vmatprep.mubr.f32.mxu0 %v526
        %697 = vmatmul.mubr.f32.gmra.mrb[0].mxu0 %v524
        %v698 = vpop.f32.mrb[0].mxu0
        %v699 = vadd.f32 %v614, %v698
        %v700 = vpop.f32.mrb[0].mxu0
        %701 = vdwg.mxu0
        %v702 = vadd.f32 %v528, %v684
        %v703 = vadd.f32 %v529, %v689
        %v704 = vadd.f32 %v530, %v694
        %v705 = vadd.f32 %v531, %v699
        %vm706 = vcmask 261120
        %707 = vst.msk [vmem:[#allocation2] sm:$0xff] %vm706, %v702
        %708 = vst.msk [vmem:[#allocation2 + $0x8] sm:$0xff] %vm706, %v703
        %709 = vst.msk [vmem:[#allocation2 + $0x10] sm:$0xff] %vm706, %v704
        %710 = vst.msk [vmem:[#allocation2 + $0x18] sm:$0xff] %vm706, %v705
        %p711 = scmp.eq.s32.totalorder %s22, 1
        // Predicated region
        $region37: #{tpu_custom_call.1} parent=31 // pred_check
          %p712 = pneg %p711
        $region38: #{tpu_custom_call.1} parent=31 // pred_check_branch
          %714 = sbr.rel (%p712) target = $region40
        $region39: #{tpu_custom_call.1} parent=31 // pred_region
          %v715 = vld [vmem:[#allocation2] sm:$0xff]
          %v716 = vld [vmem:[#allocation2 + $0x8] sm:$0xff]
          %v717 = vld [vmem:[#allocation2 + $0x10] sm:$0xff]
          %v718 = vld [vmem:[#allocation2 + $0x18] sm:$0xff]
          %719 = vst.msk [vmem:[%s186] sm:$0xff] %vm706, %v715
          %720 = vst.msk [vmem:[%s186 + $0x8] sm:$0xff] %vm706, %v716
          %721 = vst.msk [vmem:[%s186 + $0x10] sm:$0xff] %vm706, %v717
          %722 = vst.msk [vmem:[%s186 + $0x18] sm:$0xff] %vm706, %v718
        $region40: #{tpu_custom_call.1} parent=31 // pred_fallthru
          _
        %s723 = sand.u32 %s109, 1
        %s724 = scalar_lea.sflag [#allocation4], %s723
        %s725 = sand.u32 %s109, 1
        %s726 = smul.addr %s725, 32
        %s727 = scalar_lea.vmem [#allocation3], %s726
        // Predicated region
        $region41: #{tpu_custom_call.1} parent=31 // pred_check
          %p728 = pneg %p119
        $region42: #{tpu_custom_call.1} parent=31 // pred_check_branch
          %730 = sbr.rel (%p728) target = $region44
        $region43: #{tpu_custom_call.1} parent=31 // pred_region
          %s732 = ssub.s32 512, 512
          %733 = vsyncadd %s724, %s732
          %s734 = smul.addr %s21, 4
          %s735 = smul.addr %s734, 128
          %s736 = scalar_lea.hbm %s3, %s735
          %s737 = sshll.u32 %s727, 4
          %s738 = int_to_ptr.vmem [resolvable:$true] %s737
          %743 = dma.vmem_to_hbm [thread:$0]  %s738, 512, %s736, %s724, 128, 128, 8
        $region44: #{tpu_custom_call.1} parent=31 // pred_fallthru
          _
      $region32: #{tpu_custom_call.1} parent=5 // pred_fallthru
        _
      %p744 = scmp.le.s32.totalorder 2, %s12
      // Predicated region
      $region45: #{tpu_custom_call.1} parent=5 // pred_check
        %p745 = pneg %p744
      $region46: #{tpu_custom_call.1} parent=5 // pred_check_branch
        %747 = sbr.rel (%p745) target = $region48
      $region47: #{tpu_custom_call.1} parent=5 // pred_region
        %s748 = ssub.s32 %s12, 2
        // Predicated region
        $region49: #{tpu_custom_call.1} parent=47 // pred_check
          %p749 = pneg %p125
        $region50: #{tpu_custom_call.1} parent=47 // pred_check_branch
          %751 = sbr.rel (%p749) target = $region52
        $region51: #{tpu_custom_call.1} parent=47 // pred_region
          %s752 = sand.u32 %s110, 1
          %s753 = scalar_lea.sflag [#allocation4], %s752
          %s754 = sand.u32 %s110, 1
          %s755 = smul.addr %s754, 32
          %s756 = scalar_lea.vmem [#allocation3], %s755
          %757 = dma.done %s753, 512
        $region52: #{tpu_custom_call.1} parent=47 // pred_fallthru
          _
      $region48: #{tpu_custom_call.1} parent=5 // pred_fallthru
        _
    $region6: #{tpu_custom_call.1} parent=1 // loop_footer
      %s16 = sadd.s32 1, %s12
    $region7: #{tpu_custom_call.1} parent=1 // loop_footer_branch
      %11 = sbr.rel target = $region3
    $region8: #{tpu_custom_call.1} parent=1 // loop_exit
      _
    %758 = vsyncpa [#allocation4], 1
    %s759 = scalar_lea.sflag [#allocation4], 1
    %760 = vsyncpa %s759, 1

</llo_original>
